<compile_context>
chip_gen: v6e
topology: v6e:2x2x1
jax: 0.10.0
libtpu: 0.0.40
codegen_flags: <defaults>
</compile_context>

<pallas_src>
import jax
import jax.numpy as jnp
import numpy as np
from jax.experimental import pallas as pl
from jax.experimental.pallas import tpu as pltpu


# ----------------------------- kernels ---------------------------------------


def _mlp_tile(h_ref, w0_ref, b0_ref, w1_ref, b1_ref):
    """before_merge_mlp on one [tb, D0] tile; bf16 MXU operands, f32 accumulate."""
    x = jnp.dot(h_ref[...].astype(jnp.bfloat16), w0_ref[...],
                preferred_element_type=jnp.float32) + b0_ref[...]
    x = jnp.maximum(x, 0.0)
    x = jnp.dot(x.astype(jnp.bfloat16), w1_ref[...],
                preferred_element_type=jnp.float32) + b1_ref[...]
    return jnp.maximum(x, 0.0).astype(jnp.bfloat16)          # [tb, M] bf16


def _kernel_dout1(h1_ref, h2_ref, w0_ref, b0_ref, w1_ref, b1_ref,
                  wbl1_ref, wbl2_ref, bpost_ref, out_ref):
    x1 = _mlp_tile(h1_ref, w0_ref, b0_ref, w1_ref, b1_ref)
    x2 = _mlp_tile(h2_ref, w0_ref, b0_ref, w1_ref, b1_ref)
    # Bilinear merge (all folds done host-side on the tiny weight tensors):
    #   u1[b, p*M+q] = sum_k Wb[p,q,k] * Wa[q,0] * x1[b,k]
    #   u2[b, p*M+q] = sum_k Wb[q,p,k] * diag[p,q] * x2[b,k]
    u1 = jnp.dot(x1, wbl1_ref[...], preferred_element_type=jnp.float32)   # [tb, M*M] f32
    u2 = jnp.dot(x2, wbl2_ref[...], preferred_element_type=jnp.float32)
    # sum over (p,q) == sum over p fused with after_merge Linear(M,1); lane reduce,
    # then relayout to a lane-dense row (XLU has slack) and store once per tile.
    row = jnp.sum(u1 * u2, axis=-1).reshape(1, -1) + bpost_ref[...]       # [1, tb]
    out_ref[...] = row.reshape(out_ref.shape)                              # (1, 1, tb)


def _kernel_generic(h1_ref, h2_ref, w0_ref, b0_ref, w1_ref, b1_ref,
                    wbl1_ref, wbl2_ref, wpost_ref, bpost_ref, out_ref):
    """General Dout > 1 path (after_merge linear kept as a matmul)."""
    x1 = _mlp_tile(h1_ref, w0_ref, b0_ref, w1_ref, b1_ref)
    x2 = _mlp_tile(h2_ref, w0_ref, b0_ref, w1_ref, b1_ref)
    u1 = jnp.dot(x1, wbl1_ref[...], preferred_element_type=jnp.float32)
    u2 = jnp.dot(x2, wbl2_ref[...], preferred_element_type=jnp.float32)
    prod = u1 * u2                                                         # [tb, M*M] f32
    out_ref[...] = jnp.dot(prod, wpost_ref[...],
                           preferred_element_type=jnp.float32) + bpost_ref[...]


# ----------------------------- wrapper ----------------------------------------


def _round16(n):
    return max(16, ((int(n) + 15) // 16) * 16)


def _choose_tb(B):
    """Batch tile: big enough for the HBM roofline (v6e wants >=512 for ~85%), small enough
    to keep >=2 grid steps for v7x's dual TensorCores, and comfortably inside v5e's 16 MiB
    scoped-VMEM default at the largest setting."""
    if B >= 2048:
        return 1024
    if B >= 1024:
        return 512
    if B >= 512:
        return 256
    if B >= 32:
        return _round16(pl.cdiv(B, 2))     # two tiles -> both v7x cores get work
    return 16


def bilinear_mlp_predictor(h1, h2, params, *, tb=None):
    """Forward pass. h1, h2: [B, D0] f32 drug features (after the get_batch gather).
    Returns [B, Dout] f32."""
    W0, b0, W1, b1, Wb, diag, off, Wa, ba = params
    B, D0 = h1.shape
    D1 = W0.shape[1]
    M = W1.shape[1]
    Dout = Wa.shape[1]

    if tb is None:
        tb = _choose_tb(B)
    assert tb % 16 == 0 and tb >= 16
    G = pl.cdiv(B, tb)       # partial last block allowed; tail rows are sliced off below

    # ---- host-side weight algebra (tiny M*M*M tensors only; no per-batch HBM passes) ----
    # wbl1[k, p*M+q] = Wb[p,q,k];   wbl2[k, p*M+q] = Wb[q,p,k] * diag[p,q]
    wbl1 = jnp.transpose(Wb.reshape(M * M, M))
    wbl2 = (jnp.transpose(jnp.transpose(Wb, (1, 0, 2)).reshape(M * M, M))
            * diag.reshape(1, M * M))
    dout_is_one = (Dout == 1)
    if dout_is_one:
        # Fold the after_merge Linear(M,1) into the u1 operand: col p*M+q scaled by Wa[q,0].
        wbl1 = wbl1 * jnp.tile(Wa[:, 0], (M,))[None, :]
        b_post = (off @ Wa + ba).reshape(1, 1).astype(jnp.float32)
    else:
        w_post = jnp.tile(Wa, (M, 1)).astype(jnp.float32)        # [M*M, Dout]
        b_post = (off @ Wa + ba).reshape(1, Dout).astype(jnp.float32)

    w0_b, w1_b = W0.astype(jnp.bfloat16), W1.astype(jnp.bfloat16)
    wbl1_b, wbl2_b = wbl1.astype(jnp.bfloat16), wbl2.astype(jnp.bfloat16)
    b0_2d = b0.reshape(1, D1).astype(jnp.float32)
    b1_2d = b1.reshape(1, M).astype(jnp.float32)

    def fixed(shape):
        n = len(shape)
        return pl.BlockSpec(shape, lambda i, n=n: (0,) * n)

    h_spec = pl.BlockSpec((tb, D0), lambda i: (i, 0))     # f32 activations streamed as-is
    in_specs = [h_spec, h_spec,
                fixed((D0, D1)), fixed((1, D1)),          # W0, b0
                fixed((D1, M)), fixed((1, M)),            # W1, b1
                fixed((M, M * M)), fixed((M, M * M))]     # wbl1 (Wa folded), wbl2 (diag folded)
    args = [h1, h2, w0_b, b0_2d, w1_b, b1_2d, wbl1_b, wbl2_b]

    cparams = pltpu.CompilerParams(dimension_semantics=("parallel",),
                                   vmem_limit_bytes=32 * 1024 * 1024)

    if dout_is_one:
        out = pl.pallas_call(
            _kernel_dout1,
            out_shape=jax.ShapeDtypeStruct((G, 1, tb), jnp.float32),   # lane-dense rows
            grid_spec=pltpu.PrefetchScalarGridSpec(
                num_scalar_prefetch=0, grid=(G,),
                in_specs=in_specs + [fixed((1, 1))],
                out_specs=pl.BlockSpec((1, 1, tb), lambda i: (i, 0, 0))),
            compiler_params=cparams,
        )(*args, b_post)
        return out.reshape(G * tb, 1)[:B]

    out = pl.pallas_call(
        _kernel_generic,
        out_shape=jax.ShapeDtypeStruct((G * tb, Dout), jnp.float32),
        grid_spec=pltpu.PrefetchScalarGridSpec(
            num_scalar_prefetch=0, grid=(G,),
            in_specs=in_specs + [fixed((M * M, Dout)), fixed((1, Dout))],
            out_specs=pl.BlockSpec((tb, Dout), lambda i: (i, 0))),
        compiler_params=cparams,
    )(*args, w_post, b_post)
    return out[:B]


# ----------------------------- reference & params ------------------------------


def reference(h1, h2, params):
    """Pure-JAX f32 reference mirroring the PyTorch forward exactly."""
    W0, b0, W1, b1, Wb, diag, off, Wa, ba = params

    def mlp(x):
        x = jnp.maximum(x @ W0 + b0, 0.0)
        x = jnp.maximum(x @ W1 + b1, 0.0)
        return x

    x1, x2 = mlp(h1), mlp(h2)
    # torch: h_1 = W.matmul(h_1.T).T -> [b,i,j] = sum_k W[i,j,k] h1[b,k]; then permute(0,2,1)
    u1 = jnp.einsum('pqk,bk->bpq', Wb, x1)
    # torch: h_2 -> [b,p,q] = sum_k W[q,p,k] h2[b,k]   (note: u1 permuted, u2 not)
    u2 = jnp.einsum('qpk,bk->bpq', Wb, x2)
    u2 = u2 * diag[None, :, :]                       # allow_neg_eigval
    merged = (u1 * u2).sum(axis=1) + off             # sum over dim 1, += offsets
    return merged @ Wa + ba                          # after_merge_mlp (last linear, no ReLU)


def init_params(key, D0=64, D1=32, M=16, Dout=1):
    ks = jax.random.split(key, 9)
    W0 = 0.1 * jax.random.normal(ks[0], (D0, D1), jnp.float32)
    b0 = 0.1 * jax.random.normal(ks[1], (D1,), jnp.float32)
    W1 = 0.1 * jax.random.normal(ks[2], (D1, M), jnp.float32)
    b1 = 0.1 * jax.random.normal(ks[3], (M,), jnp.float32)
    # bilinear_weights = 0.01*randn(M,M,M) + eye(M) broadcast along dim 0
    Wb = (0.01 * jax.random.normal(ks[4], (M, M, M), jnp.float32)
          + jnp.eye(M, dtype=jnp.float32)[None])
    off = 0.01 * jax.random.normal(ks[5], (M,), jnp.float32)
    diag = 0.01 * jax.random.normal(ks[6], (M, M), jnp.float32) + 1.0    # allow_neg_eigval
    Wa = 0.1 * jax.random.normal(ks[7], (M, Dout), jnp.float32)
    ba = 0.1 * jax.random.normal(ks[8], (Dout,), jnp.float32)
    return (W0, b0, W1, b1, Wb, diag, off, Wa, ba)


# ----------------------------- self-test ----------------------------------------


if __name__ == "__main__":
    key = jax.random.PRNGKey(0)
    k_data, k_pairs, k_cells, k_params = jax.random.split(key, 4)

    num_drugs, D0, B = 10, 64, 16
    x_drugs = jax.random.normal(k_data, (num_drugs, D0), jnp.float32)
    drug_pairs = jax.random.randint(k_pairs, (B, 2), 0, num_drugs)   # drug_drug_batch[0]
    cell_lines = jax.random.randint(k_cells, (B,), 0, 4)             # unused (non-Bayesian path)

    # get_batch (glue, plain JAX gather)
    h_drug_1 = x_drugs[drug_pairs[:, 0]]
    h_drug_2 = x_drugs[drug_pairs[:, 1]]

    params = init_params(k_params, D0=D0, D1=32, M=16, Dout=1)
    fwd = jax.jit(bilinear_mlp_predictor)

    out = jax.block_until_ready(fwd(h_drug_1, h_drug_2, params))
    ref = jax.block_until_ready(reference(h_drug_1, h_drug_2, params))
    assert out.shape == (B, 1)
    # bf16 MXU operands (f32 accumulate) -> loosened tolerance vs pure-f32 reference
    np.testing.assert_allclose(np.asarray(out), np.asarray(ref), rtol=5e-2, atol=5e-2)

    # Tail handling: batch not a multiple of the tile -> partial last block, no host-side pad.
    B2 = 50
    pairs2 = jax.random.randint(jax.random.PRNGKey(1), (B2, 2), 0, num_drugs)
    h1b, h2b = x_drugs[pairs2[:, 0]], x_drugs[pairs2[:, 1]]
    out2 = jax.block_until_ready(fwd(h1b, h2b, params))
    ref2 = jax.block_until_ready(reference(h1b, h2b, params))
    assert out2.shape == (B2, 1)
    np.testing.assert_allclose(np.asarray(out2), np.asarray(ref2), rtol=5e-2, atol=5e-2)

    # Generic Dout > 1 path (after_merge linear kept as an MXU matmul in the kernel).
    B3 = 24
    params4 = init_params(jax.random.PRNGKey(2), D0=D0, D1=32, M=16, Dout=4)
    pairs3 = jax.random.randint(jax.random.PRNGKey(3), (B3, 2), 0, num_drugs)
    h1c, h2c = x_drugs[pairs3[:, 0]], x_drugs[pairs3[:, 1]]
    out3 = jax.block_until_ready(fwd(h1c, h2c, params4))
    ref3 = jax.block_until_ready(reference(h1c, h2c, params4))
    assert out3.shape == (B3, 4)
    np.testing.assert_allclose(np.asarray(out3), np.asarray(ref3), rtol=5e-2, atol=5e-2)

    print("KERNEL_OK")
</pallas_src>

<mosaic_0001>
module attributes {stable_mosaic.version = 11 : i64} {
  func.func @_kernel_dout1(%arg0: i32, %arg1: memref<16x64xf32, #tpu.memory_space<vmem>>, %arg2: memref<16x64xf32, #tpu.memory_space<vmem>>, %arg3: memref<64x32xbf16, #tpu.memory_space<vmem>>, %arg4: memref<1x32xf32, #tpu.memory_space<vmem>>, %arg5: memref<32x16xbf16, #tpu.memory_space<vmem>>, %arg6: memref<1x16xf32, #tpu.memory_space<vmem>>, %arg7: memref<16x256xbf16, #tpu.memory_space<vmem>>, %arg8: memref<16x256xbf16, #tpu.memory_space<vmem>>, %arg9: memref<1x1xf32, #tpu.memory_space<vmem>>, %arg10: memref<1x1x16xf32, #tpu.memory_space<vmem>>) attributes {dimension_semantics = [#tpu.dimension_semantics<parallel>], iteration_bounds = array<i64: 1>, scalar_prefetch = 0 : i64, scratch_operands = 0 : i64, tpu.core_type = #tpu.core_type<tc>, window_params = [{transform_indices = @transform_0, window_bounds = array<i64: 16, 64>}, {transform_indices = @transform_1, window_bounds = array<i64: 16, 64>}, {pipeline_mode = #tpu.pipeline_mode<synchronous>, transform_indices = @transform_2, window_bounds = array<i64: 64, 32>}, {pipeline_mode = #tpu.pipeline_mode<synchronous>, transform_indices = @transform_3, window_bounds = array<i64: 1, 32>}, {pipeline_mode = #tpu.pipeline_mode<synchronous>, transform_indices = @transform_4, window_bounds = array<i64: 32, 16>}, {pipeline_mode = #tpu.pipeline_mode<synchronous>, transform_indices = @transform_5, window_bounds = array<i64: 1, 16>}, {pipeline_mode = #tpu.pipeline_mode<synchronous>, transform_indices = @transform_6, window_bounds = array<i64: 16, 256>}, {pipeline_mode = #tpu.pipeline_mode<synchronous>, transform_indices = @transform_7, window_bounds = array<i64: 16, 256>}, {pipeline_mode = #tpu.pipeline_mode<synchronous>, transform_indices = @transform_8, window_bounds = array<i64: 1, 1>}, {transform_indices = @transform_9, window_bounds = array<i64: 1, 1, 16>}]} {
    %c0 = arith.constant 0 : index
    %c0_0 = arith.constant 0 : index
    %0 = vector.load %arg1[%c0, %c0_0] : memref<16x64xf32, #tpu.memory_space<vmem>>, vector<16x64xf32>
    %1 = arith.truncf %0 : vector<16x64xf32> to vector<16x64xbf16>
    %c0_1 = arith.constant 0 : index
    %c0_2 = arith.constant 0 : index
    %2 = vector.load %arg3[%c0_1, %c0_2] : memref<64x32xbf16, #tpu.memory_space<vmem>>, vector<64x32xbf16>
    %cst = arith.constant dense<0.000000e+00> : vector<16x32xf32>
    %3 = tpu.matmul %1, %2, %cst {dimension_numbers = #tpu.dot_dimension_numbers<[1], [0], [0], [1], [0, 0, 1, 1], [], []>} : vector<16x64xbf16>, vector<64x32xbf16>, vector<16x32xf32> -> vector<16x32xf32>
    %c0_3 = arith.constant 0 : index
    %c0_4 = arith.constant 0 : index
    %4 = vector.load %arg4[%c0_3, %c0_4] : memref<1x32xf32, #tpu.memory_space<vmem>>, vector<1x32xf32>
    %5 = vector.broadcast %4 : vector<1x32xf32> to vector<16x32xf32>
    %6 = arith.addf %3, %5 : vector<16x32xf32>
    %cst_5 = arith.constant 0.000000e+00 : f32
    %7 = vector.broadcast %cst_5 : f32 to vector<16x32xf32>
    %8 = arith.maximumf %6, %7 : vector<16x32xf32>
    %9 = arith.truncf %8 : vector<16x32xf32> to vector<16x32xbf16>
    %c0_6 = arith.constant 0 : index
    %c0_7 = arith.constant 0 : index
    %10 = vector.load %arg5[%c0_6, %c0_7] : memref<32x16xbf16, #tpu.memory_space<vmem>>, vector<32x16xbf16>
    %cst_8 = arith.constant dense<0.000000e+00> : vector<16x16xf32>
    %11 = tpu.matmul %9, %10, %cst_8 {dimension_numbers = #tpu.dot_dimension_numbers<[1], [0], [0], [1], [0, 0, 1, 1], [], []>} : vector<16x32xbf16>, vector<32x16xbf16>, vector<16x16xf32> -> vector<16x16xf32>
    %c0_9 = arith.constant 0 : index
    %c0_10 = arith.constant 0 : index
    %12 = vector.load %arg6[%c0_9, %c0_10] : memref<1x16xf32, #tpu.memory_space<vmem>>, vector<1x16xf32>
    %13 = vector.broadcast %12 : vector<1x16xf32> to vector<16x16xf32>
    %14 = arith.addf %11, %13 : vector<16x16xf32>
    %cst_11 = arith.constant 0.000000e+00 : f32
    %15 = vector.broadcast %cst_11 : f32 to vector<16x16xf32>
    %16 = arith.maximumf %14, %15 : vector<16x16xf32>
    %17 = arith.truncf %16 : vector<16x16xf32> to vector<16x16xbf16>
    %c0_12 = arith.constant 0 : index
    %c0_13 = arith.constant 0 : index
    %18 = vector.load %arg2[%c0_12, %c0_13] : memref<16x64xf32, #tpu.memory_space<vmem>>, vector<16x64xf32>
    %19 = arith.truncf %18 : vector<16x64xf32> to vector<16x64xbf16>
    %c0_14 = arith.constant 0 : index
    %c0_15 = arith.constant 0 : index
    %20 = vector.load %arg3[%c0_14, %c0_15] : memref<64x32xbf16, #tpu.memory_space<vmem>>, vector<64x32xbf16>
    %cst_16 = arith.constant dense<0.000000e+00> : vector<16x32xf32>
    %21 = tpu.matmul %19, %20, %cst_16 {dimension_numbers = #tpu.dot_dimension_numbers<[1], [0], [0], [1], [0, 0, 1, 1], [], []>} : vector<16x64xbf16>, vector<64x32xbf16>, vector<16x32xf32> -> vector<16x32xf32>
    %c0_17 = arith.constant 0 : index
    %c0_18 = arith.constant 0 : index
    %22 = vector.load %arg4[%c0_17, %c0_18] : memref<1x32xf32, #tpu.memory_space<vmem>>, vector<1x32xf32>
    %23 = vector.broadcast %22 : vector<1x32xf32> to vector<16x32xf32>
    %24 = arith.addf %21, %23 : vector<16x32xf32>
    %cst_19 = arith.constant 0.000000e+00 : f32
    %25 = vector.broadcast %cst_19 : f32 to vector<16x32xf32>
    %26 = arith.maximumf %24, %25 : vector<16x32xf32>
    %27 = arith.truncf %26 : vector<16x32xf32> to vector<16x32xbf16>
    %c0_20 = arith.constant 0 : index
    %c0_21 = arith.constant 0 : index
    %28 = vector.load %arg5[%c0_20, %c0_21] : memref<32x16xbf16, #tpu.memory_space<vmem>>, vector<32x16xbf16>
    %cst_22 = arith.constant dense<0.000000e+00> : vector<16x16xf32>
    %29 = tpu.matmul %27, %28, %cst_22 {dimension_numbers = #tpu.dot_dimension_numbers<[1], [0], [0], [1], [0, 0, 1, 1], [], []>} : vector<16x32xbf16>, vector<32x16xbf16>, vector<16x16xf32> -> vector<16x16xf32>
    %c0_23 = arith.constant 0 : index
    %c0_24 = arith.constant 0 : index
    %30 = vector.load %arg6[%c0_23, %c0_24] : memref<1x16xf32, #tpu.memory_space<vmem>>, vector<1x16xf32>
    %31 = vector.broadcast %30 : vector<1x16xf32> to vector<16x16xf32>
    %32 = arith.addf %29, %31 : vector<16x16xf32>
    %cst_25 = arith.constant 0.000000e+00 : f32
    %33 = vector.broadcast %cst_25 : f32 to vector<16x16xf32>
    %34 = arith.maximumf %32, %33 : vector<16x16xf32>
    %35 = arith.truncf %34 : vector<16x16xf32> to vector<16x16xbf16>
    %c0_26 = arith.constant 0 : index
    %c0_27 = arith.constant 0 : index
    %36 = vector.load %arg7[%c0_26, %c0_27] : memref<16x256xbf16, #tpu.memory_space<vmem>>, vector<16x256xbf16>
    %cst_28 = arith.constant dense<0.000000e+00> : vector<16x256xf32>
    %37 = tpu.matmul %17, %36, %cst_28 {dimension_numbers = #tpu.dot_dimension_numbers<[1], [0], [0], [1], [0, 0, 1, 1], [], []>} : vector<16x16xbf16>, vector<16x256xbf16>, vector<16x256xf32> -> vector<16x256xf32>
    %c0_29 = arith.constant 0 : index
    %c0_30 = arith.constant 0 : index
    %38 = vector.load %arg8[%c0_29, %c0_30] : memref<16x256xbf16, #tpu.memory_space<vmem>>, vector<16x256xbf16>
    %cst_31 = arith.constant dense<0.000000e+00> : vector<16x256xf32>
    %39 = tpu.matmul %35, %38, %cst_31 {dimension_numbers = #tpu.dot_dimension_numbers<[1], [0], [0], [1], [0, 0, 1, 1], [], []>} : vector<16x16xbf16>, vector<16x256xbf16>, vector<16x256xf32> -> vector<16x256xf32>
    %40 = arith.mulf %37, %39 : vector<16x256xf32>
    %cst_32 = arith.constant dense<0.000000e+00> : vector<16xf32>
    %41 = vector.multi_reduction <add>, %40, %cst_32 [1] : vector<16x256xf32> to vector<16xf32>
    %42 = vector.shape_cast %41 : vector<16xf32> to vector<1x16xf32>
    %c0_33 = arith.constant 0 : index
    %c0_34 = arith.constant 0 : index
    %43 = vector.load %arg9[%c0_33, %c0_34] : memref<1x1xf32, #tpu.memory_space<vmem>>, vector<1x1xf32>
    %44 = vector.broadcast %43 : vector<1x1xf32> to vector<1x16xf32>
    %45 = arith.addf %42, %44 : vector<1x16xf32>
    %46 = vector.shape_cast %45 : vector<1x16xf32> to vector<1x1x16xf32>
    %c0_35 = arith.constant 0 : index
    %c0_36 = arith.constant 0 : index
    %c0_37 = arith.constant 0 : index
    %47 = vector.load %arg10[%c0_35, %c0_36, %c0_37] : memref<1x1x16xf32, #tpu.memory_space<vmem>>, vector<1x1x16xf32>
    tpu.vector_store %arg10[%c0_35, %c0_36, %c0_37], %46 {strides = array<i32>} : memref<1x1x16xf32, #tpu.memory_space<vmem>>, vector<1x1x16xf32>,
    return
  }
  func.func @transform_0(%arg0: i32) -> (i32, i32) {
    %c0_i32 = arith.constant 0 : i32
    %c0_i32_0 = arith.constant 0 : i32
    return %arg0, %c0_i32 : i32, i32
  }
  func.func @transform_1(%arg0: i32) -> (i32, i32) {
    %c0_i32 = arith.constant 0 : i32
    %c0_i32_0 = arith.constant 0 : i32
    return %arg0, %c0_i32 : i32, i32
  }
  func.func @transform_2(%arg0: i32) -> (i32, i32) {
    %c0_i32 = arith.constant 0 : i32
    %c0_i32_0 = arith.constant 0 : i32
    %c0_i32_1 = arith.constant 0 : i32
    return %c0_i32, %c0_i32_0 : i32, i32
  }
  func.func @transform_3(%arg0: i32) -> (i32, i32) {
    %c0_i32 = arith.constant 0 : i32
    %c0_i32_0 = arith.constant 0 : i32
    %c0_i32_1 = arith.constant 0 : i32
    return %c0_i32, %c0_i32_0 : i32, i32
  }
  func.func @transform_4(%arg0: i32) -> (i32, i32) {
    %c0_i32 = arith.constant 0 : i32
    %c0_i32_0 = arith.constant 0 : i32
    %c0_i32_1 = arith.constant 0 : i32
    return %c0_i32, %c0_i32_0 : i32, i32
  }
  func.func @transform_5(%arg0: i32) -> (i32, i32) {
    %c0_i32 = arith.constant 0 : i32
    %c0_i32_0 = arith.constant 0 : i32
    %c0_i32_1 = arith.constant 0 : i32
    return %c0_i32, %c0_i32_0 : i32, i32
  }
  func.func @transform_6(%arg0: i32) -> (i32, i32) {
    %c0_i32 = arith.constant 0 : i32
    %c0_i32_0 = arith.constant 0 : i32
    %c0_i32_1 = arith.constant 0 : i32
    return %c0_i32, %c0_i32_0 : i32, i32
  }
  func.func @transform_7(%arg0: i32) -> (i32, i32) {
    %c0_i32 = arith.constant 0 : i32
    %c0_i32_0 = arith.constant 0 : i32
    %c0_i32_1 = arith.constant 0 : i32
    return %c0_i32, %c0_i32_0 : i32, i32
  }
  func.func @transform_8(%arg0: i32) -> (i32, i32) {
    %c0_i32 = arith.constant 0 : i32
    %c0_i32_0 = arith.constant 0 : i32
    %c0_i32_1 = arith.constant 0 : i32
    return %c0_i32, %c0_i32_0 : i32, i32
  }
  func.func @transform_9(%arg0: i32) -> (i32, i32, i32) {
    %c0_i32 = arith.constant 0 : i32
    %c0_i32_0 = arith.constant 0 : i32
    %c0_i32_1 = arith.constant 0 : i32
    return %arg0, %c0_i32, %c0_i32_0 : i32, i32, i32
  }
}

</mosaic_0001>

<llo_original>
// kernel: tile.6
$region0: #{tile.6}
  #allocation0 [shape = 's32[1]{0}', space=sflag, size = 0x4, scoped, tag = 'scoped memory for tile.6']
  %s0 = inlined_call_operand.vmem [shape: f32[16], index: 0, kind: input, shape index: {}]
  %s1 = inlined_call_operand.vmem [shape: f32[16,16], index: 1, kind: output, shape index: {}]
  // Predicated region
  $region2: #{tile.6} parent=0 // pred_check
    _
  $region3: #{tile.6} parent=0 // pred_check_branch
    %3 = sbr.rel (0) target = $region5
  $region4: #{tile.6} parent=0 // pred_region
    _
  $region5: #{tile.6} parent=0 // pred_fallthru
    _
  %v4 = vld [vmem:[%s0] ss:$0 sm:$0xff]
  %5 = vst [vmem:[%s1] sm:$0xff] %v4
  %s6 = scalar_lea.vmem %s1, 8
  %7 = vst [vmem:[%s6] sm:$0xff] %v4

// kernel: mul.13
$region0: #{mul.13}
  %s0 = inlined_call_operand.vmem [shape: f32[16,16], index: 0, kind: input, shape index: {}]
  %s1 = inlined_call_operand.vmem [shape: f32[256], index: 1, kind: output, shape index: {}]
  $region1: #{mul.13} parent=0
    #allocation0 [shape = 'u8[4096]{0}', space=vmem, size = 0x1000, scoped, tag = 'scoped mem for output reshape']
    %s2 = smov 3
    %v3 = vld [vmem:[%s0] ss:$8 sm:%s2]
    %vm4 = vcmask 130048
    %5 = vst.msk [vmem:[#allocation0] sm:$0x3] %vm4, %v3
    %s6 = scalar_lea.vmem %s0, 7
    %s7 = smov 3
    %v8 = vld [vmem:[%s6] ss:$8 sm:%s7]
    %9 = vrot.lane.b32.xlu0 %v8, 112
    %v10 = vpop.permute.xlu0 %9
    %vm11 = vcmask 1048448
    %12 = vst.msk [vmem:[#allocation0] sm:$0x3] %vm11, %v10
    %s13 = scalar_lea.vmem %s0, 6
    %s14 = smov 3
    %v15 = vld [vmem:[%s13] ss:$8 sm:%s14]
    %16 = vrot.lane.b32.xlu0 %v15, 96
    %v17 = vpop.permute.xlu0 %16
    %vm18 = vcmask 917248
    %19 = vst.msk [vmem:[#allocation0] sm:$0x3] %vm18, %v17
    %s20 = scalar_lea.vmem %s0, 5
    %s21 = smov 3
    %v22 = vld [vmem:[%s20] ss:$8 sm:%s21]
    %23 = vrot.lane.b32.xlu0 %v22, 80
    %v24 = vpop.permute.xlu0 %23
    %vm25 = vcmask 786048
    %26 = vst.msk [vmem:[#allocation0] sm:$0x3] %vm25, %v24
    %s27 = scalar_lea.vmem %s0, 4
    %s28 = smov 3
    %v29 = vld [vmem:[%s27] ss:$8 sm:%s28]
    %30 = vrot.lane.b32.xlu0 %v29, 64
    %v31 = vpop.permute.xlu0 %30
    %vm32 = vcmask 654848
    %33 = vst.msk [vmem:[#allocation0] sm:$0x3] %vm32, %v31
    %s34 = scalar_lea.vmem %s0, 3
    %s35 = smov 3
    %v36 = vld [vmem:[%s34] ss:$8 sm:%s35]
    %37 = vrot.lane.b32.xlu0 %v36, 48
    %v38 = vpop.permute.xlu0 %37
    %vm39 = vcmask 523648
    %40 = vst.msk [vmem:[#allocation0] sm:$0x3] %vm39, %v38
    %s41 = scalar_lea.vmem %s0, 2
    %s42 = smov 3
    %v43 = vld [vmem:[%s41] ss:$8 sm:%s42]
    %44 = vrot.lane.b32.xlu0 %v43, 32
    %v45 = vpop.permute.xlu0 %44
    %vm46 = vcmask 392448
    %47 = vst.msk [vmem:[#allocation0] sm:$0x3] %vm46, %v45
    %s48 = scalar_lea.vmem %s0, 1
    %s49 = smov 3
    %v50 = vld [vmem:[%s48] ss:$8 sm:%s49]
    %51 = vrot.lane.b32.xlu0 %v50, 16
    %v52 = vpop.permute.xlu0 %51
    %vm53 = vcmask 261248
    %54 = vst.msk [vmem:[#allocation0] sm:$0x3] %vm53, %v52
    %s56 = sshll.u32 1, 2
    %s57 = ssub.s32 %s56, 1
    %v59 = vld [vmem:[#allocation0] sm:%s57]
    %s60 = sshll.u32 1, 2
    %s61 = ssub.s32 %s60, 1
    %62 = vst [vmem:[%s1] sm:%s61] %v59

// kernel: bilinear_mlp_predictor.1
$region0: #{bilinear_mlp_predictor.1}
  #allocation0 [shape = 'u32[]', space=smem, size = 0x4, offset = 0x4, fixed_abs, tag = 'smem constant byte address 0x4 - core index']
  #allocation1 [shape = 'u32[144,128]{1,0:T(1,128)}', space=vmem, size = 0x12000, scoped, tag = 'internal scratch']
  #allocation2 [shape = 'f32[1,1]{1,0:T(1,128)S(1)}', space=vmem, size = 0x200, scoped, tag = 'scoped memory for bilinear_mlp_predictor.1']
  %s0 = inlined_call_operand.vmem [shape: f32[16,64], index: 0, kind: input, shape index: {}]
  %s1 = inlined_call_operand.vmem [shape: f32[16,64], index: 1, kind: input, shape index: {}]
  %s2 = inlined_call_operand.vmem [shape: bf16[64,32], index: 2, kind: input, shape index: {}]
  %s3 = inlined_call_operand.vmem [shape: f32[1,32], index: 3, kind: input, shape index: {}]
  %s4 = inlined_call_operand.vmem [shape: bf16[32,16], index: 4, kind: input, shape index: {}]
  %s5 = inlined_call_operand.vmem [shape: f32[1,16], index: 5, kind: input, shape index: {}]
  %s6 = inlined_call_operand.vmem [shape: bf16[16,256], index: 6, kind: input, shape index: {}]
  %s7 = inlined_call_operand.vmem [shape: bf16[16,256], index: 7, kind: input, shape index: {}]
  %s8 = inlined_call_operand.<no memory space> [shape: f32[1,1], index: 8, kind: input, shape index: {}]
  %s9 = inlined_call_operand.hbm [shape: f32[1,1,16], index: 9, kind: output, shape index: {}]
  %s10 = sld [smem:[#allocation0]]
  $region46: #{bilinear_mlp_predictor.1} parent=0
    _
  %s12 = ssub.s32 1, %s10
  %s13 = scalar_select 0, %s12, %s10
  %v14 = vstv %s8
  %15 = vst [vmem:[#allocation2] sm:$0x1] %v14
  $region1: #{bilinear_mlp_predictor.1} parent=0
    #allocation3 [shape = 'u8[512]{0}', space=vmem, size = 0x400, scoped, tag = 'output window, operand 0, single buffered']
    #allocation4 [shape = 's32[1]{0}', space=sflag, size = 0x4, scoped, tag = 'scoped memory for bilinear_mlp_predictor.1']
    %16 = vsyncpa [#allocation4], 0
    // Predicated region
    $region2: #{bilinear_mlp_predictor.1} parent=1 // pred_check
      _
    $region3: #{bilinear_mlp_predictor.1} parent=1 // pred_check_branch
      %18 = sbr.rel (0) target = $region5
    $region4: #{bilinear_mlp_predictor.1} parent=1 // pred_region
      _
    $region5: #{bilinear_mlp_predictor.1} parent=1 // pred_fallthru
      _
    // Predicated region
    $region6: #{bilinear_mlp_predictor.1} parent=1 // pred_check
      _
    $region7: #{bilinear_mlp_predictor.1} parent=1 // pred_check_branch
      %20 = sbr.rel (0) target = $region9
    $region8: #{bilinear_mlp_predictor.1} parent=1 // pred_region
      _
    $region9: #{bilinear_mlp_predictor.1} parent=1 // pred_fallthru
      _
    // Predicated region
    $region10: #{bilinear_mlp_predictor.1} parent=1 // pred_check
      _
    $region11: #{bilinear_mlp_predictor.1} parent=1 // pred_check_branch
      %22 = sbr.rel (0) target = $region13
    $region12: #{bilinear_mlp_predictor.1} parent=1 // pred_region
      _
    $region13: #{bilinear_mlp_predictor.1} parent=1 // pred_fallthru
      _
    // Predicated region
    $region14: #{bilinear_mlp_predictor.1} parent=1 // pred_check
      _
    $region15: #{bilinear_mlp_predictor.1} parent=1 // pred_check_branch
      %24 = sbr.rel (0) target = $region17
    $region16: #{bilinear_mlp_predictor.1} parent=1 // pred_region
      _
    $region17: #{bilinear_mlp_predictor.1} parent=1 // pred_fallthru
      _
    // Predicated region
    $region18: #{bilinear_mlp_predictor.1} parent=1 // pred_check
      _
    $region19: #{bilinear_mlp_predictor.1} parent=1 // pred_check_branch
      %26 = sbr.rel (0) target = $region21
    $region20: #{bilinear_mlp_predictor.1} parent=1 // pred_region
      _
    $region21: #{bilinear_mlp_predictor.1} parent=1 // pred_fallthru
      _
    // Predicated region
    $region22: #{bilinear_mlp_predictor.1} parent=1 // pred_check
      _
    $region23: #{bilinear_mlp_predictor.1} parent=1 // pred_check_branch
      %28 = sbr.rel (0) target = $region25
    $region24: #{bilinear_mlp_predictor.1} parent=1 // pred_region
      _
    $region25: #{bilinear_mlp_predictor.1} parent=1 // pred_fallthru
      _
    // Predicated region
    $region26: #{bilinear_mlp_predictor.1} parent=1 // pred_check
      _
    $region27: #{bilinear_mlp_predictor.1} parent=1 // pred_check_branch
      %30 = sbr.rel (0) target = $region29
    $region28: #{bilinear_mlp_predictor.1} parent=1 // pred_region
      _
    $region29: #{bilinear_mlp_predictor.1} parent=1 // pred_fallthru
      _
    // Predicated region
    $region30: #{bilinear_mlp_predictor.1} parent=1 // pred_check
      _
    $region31: #{bilinear_mlp_predictor.1} parent=1 // pred_check_branch
      %32 = sbr.rel (0) target = $region33
    $region32: #{bilinear_mlp_predictor.1} parent=1 // pred_region
      _
    $region33: #{bilinear_mlp_predictor.1} parent=1 // pred_fallthru
      _
    // Predicated region
    $region34: #{bilinear_mlp_predictor.1} parent=1 // pred_check
      _
    $region35: #{bilinear_mlp_predictor.1} parent=1 // pred_check_branch
      %34 = sbr.rel (0) target = $region37
    $region36: #{bilinear_mlp_predictor.1} parent=1 // pred_region
      _
    $region37: #{bilinear_mlp_predictor.1} parent=1 // pred_fallthru
      _
    %v36 = vld [vmem:[%s0] sm:$0xff]
    %v37 = vld [vmem:[%s0 + $0x8] sm:$0xff]
    %v38 = vpack.c.bf16 %v37, %v36
    %v39 = vld [vmem:[%s2] sm:$0xf]
    %v40 = vld [vmem:[%s2 + $0x4] sm:$0xf]
    %v41 = vld [vmem:[%s2 + $0x8] sm:$0xf]
    %v42 = vld [vmem:[%s2 + $0xc] sm:$0xf]
    %v43 = vld [vmem:[%s2 + $0x10] sm:$0xf]
    %v44 = vld [vmem:[%s2 + $0x14] sm:$0xf]
    %v45 = vld [vmem:[%s2 + $0x18] sm:$0xf]
    %v46 = vld [vmem:[%s2 + $0x1c] sm:$0xf]
    %v47 = vld [vmem:[%s3] sm:$0x1]
    %v49 = vlaneseq
    %v50 = vshrl.u32 %v49, 7
    %v51 = vsub.s32 0, %v50
    %v52 = vrot.slane %v47, %v51
    %v62 = vunpack.c.l.b16 %v39
    %v63 = vunpack.c.l.b16 %v40
    %v64 = vunpack.c.l.b16 %v41
    %v65 = vunpack.c.l.b16 %v42
    %v66 = vunpack.c.l.b16 %v43
    %v67 = vunpack.c.l.b16 %v44
    %v68 = vunpack.c.l.b16 %v45
    %v69 = vunpack.c.l.b16 %v46
    %v70 = vpack.c.b16 %v63, %v62
    %v71 = vpack.c.b16 %v65, %v64
    %v72 = vpack.c.b16 %v67, %v66
    %v73 = vpack.c.b16 %v69, %v68
    %vm78 = vcmask 523264
    %v80 = vsel %vm78, %v38, 0
    %82 = vmatprep.subr.bf16.mxu0 0
    %83 = vmatpush1.bf16.msra.mxu0 0
    %84 = vmatprep.subr.bf16.mxu0 0
    %85 = vmatpush1.bf16.msra.mxu0 0
    %86 = vmatprep.subr.bf16.mxu0 0
    %87 = vmatpush1.bf16.msra.mxu0 0
    %88 = vmatprep.subr.bf16.mxu0 0
    %89 = vmatpush1.bf16.msra.mxu0 0
    %90 = vmatprep.subr.bf16.mxu0 0
    %91 = vmatpush1.bf16.msra.mxu0 %v73
    %92 = vmatprep.subr.bf16.mxu0 0
    %93 = vmatpush1.bf16.msra.mxu0 %v72
    %94 = vmatprep.subr.bf16.mxu0 0
    %95 = vmatpush1.bf16.msra.mxu0 %v71
    %96 = vmatprep.subr.bf16.mxu0 0
    %97 = vmatpush1.bf16.msra.mxu0 %v70
    %98 = vmatprep.subr.bf16.mxu0 0
    %99 = vmatpush2.bf16.msra.mxu0 0
    %100 = vmatprep.subr.bf16.mxu0 0
    %101 = vmatpush2.bf16.msra.mxu0 0
    %102 = vmatprep.subr.bf16.mxu0 0
    %103 = vmatpush2.bf16.msra.mxu0 0
    %104 = vmatprep.subr.bf16.mxu0 0
    %105 = vmatpush2.bf16.msra.mxu0 0
    %106 = vmatprep.subr.bf16.mxu0 0
    %107 = vmatpush2.bf16.msra.mxu0 0
    %108 = vmatprep.subr.bf16.mxu0 0
    %109 = vmatpush2.bf16.msra.mxu0 0
    %110 = vmatprep.subr.bf16.mxu0 0
    %111 = vmatpush2.bf16.msra.mxu0 0
    %112 = vmatprep.subr.bf16.mxu0 0
    %113 = vmatpush2.bf16.msra.mxu0 0
    %114 = vmatprep.mubr.bf16.mxu0 0
    %115 = vmatmul.mubr.bf16.gmra.mxu0 %v80
    %v116 = vpop.f32.mrf.mxu0
    %v117 = vadd.f32 %v52, %v116
    %v118 = vpop.f32.mrf.mxu0
    %v119 = vpop.f32.mrf.mxu0
    %v120 = vadd.f32 %v52, %v119
    %v121 = vpop.f32.mrf.mxu0
    %122 = vdwg.mxu0
    %v123 = vmax.f32 %v117, 0.0
    %v124 = vmax.f32 %v120, 0.0
    %v125 = vpack.c.bf16 %v124, %v123
    %v126 = vld [vmem:[%s4] sm:$0xf]
    %v127 = vld [vmem:[%s4 + $0x4] sm:$0xf]
    %v128 = vld [vmem:[%s4 + $0x8] sm:$0xf]
    %v129 = vld [vmem:[%s4 + $0xc] sm:$0xf]
    %v130 = vld [vmem:[%s5] sm:$0x1]
    %v132 = vlaneseq
    %v133 = vshrl.u32 %v132, 7
    %v134 = vsub.s32 0, %v133
    %v135 = vrot.slane %v130, %v134
    %v141 = vunpack.c.l.b16 %v126
    %v142 = vunpack.c.l.b16 %v127
    %v143 = vunpack.c.l.b16 %v128
    %v144 = vunpack.c.l.b16 %v129
    %v145 = vpack.c.b16 %v142, %v141
    %v146 = vpack.c.b16 %v144, %v143
    %vm149 = vcmask 261120
    %v151 = vsel %vm149, %v125, 0
    %153 = vmatprep.subr.bf16.mxu0 0
    %154 = vmatpush1.bf16.msra.mxu0 0
    %155 = vmatprep.subr.bf16.mxu0 0
    %156 = vmatpush1.bf16.msra.mxu0 0
    %157 = vmatprep.subr.bf16.mxu0 0
    %158 = vmatpush1.bf16.msra.mxu0 0
    %159 = vmatprep.subr.bf16.mxu0 0
    %160 = vmatpush1.bf16.msra.mxu0 0
    %161 = vmatprep.subr.bf16.mxu0 0
    %162 = vmatpush1.bf16.msra.mxu0 0
    %163 = vmatprep.subr.bf16.mxu0 0
    %164 = vmatpush1.bf16.msra.mxu0 0
    %165 = vmatprep.subr.bf16.mxu0 0
    %166 = vmatpush1.bf16.msra.mxu0 %v146
    %167 = vmatprep.subr.bf16.mxu0 0
    %168 = vmatpush1.bf16.msra.mxu0 %v145
    %169 = vmatprep.subr.bf16.mxu0 0
    %170 = vmatpush2.bf16.msra.mxu0 0
    %171 = vmatprep.subr.bf16.mxu0 0
    %172 = vmatpush2.bf16.msra.mxu0 0
    %173 = vmatprep.subr.bf16.mxu0 0
    %174 = vmatpush2.bf16.msra.mxu0 0
    %175 = vmatprep.subr.bf16.mxu0 0
    %176 = vmatpush2.bf16.msra.mxu0 0
    %177 = vmatprep.subr.bf16.mxu0 0
    %178 = vmatpush2.bf16.msra.mxu0 0
    %179 = vmatprep.subr.bf16.mxu0 0
    %180 = vmatpush2.bf16.msra.mxu0 0
    %181 = vmatprep.subr.bf16.mxu0 0
    %182 = vmatpush2.bf16.msra.mxu0 0
    %183 = vmatprep.subr.bf16.mxu0 0
    %184 = vmatpush2.bf16.msra.mxu0 0
    %185 = vmatprep.mubr.bf16.mxu0 0
    %186 = vmatmul.mubr.bf16.gmra.mxu0 %v151
    %v187 = vpop.f32.mrf.mxu0
    %v188 = vadd.f32 %v135, %v187
    %v189 = vpop.f32.mrf.mxu0
    %v190 = vpop.f32.mrf.mxu0
    %v191 = vadd.f32 %v135, %v190
    %v192 = vpop.f32.mrf.mxu0
    %193 = vdwg.mxu0
    %v194 = vmax.f32 %v188, 0.0
    %v195 = vmax.f32 %v191, 0.0
    %v196 = vpack.c.bf16 %v195, %v194
    %v197 = vld [vmem:[%s1] sm:$0xff]
    %v198 = vld [vmem:[%s1 + $0x8] sm:$0xff]
    %v199 = vpack.c.bf16 %v198, %v197
    %v201 = vsel %vm78, %v199, 0
    %203 = vmatprep.subr.bf16.mxu0 0
    %204 = vmatpush1.bf16.msra.mxu0 0
    %205 = vmatprep.subr.bf16.mxu0 0
    %206 = vmatpush1.bf16.msra.mxu0 0
    %207 = vmatprep.subr.bf16.mxu0 0
    %208 = vmatpush1.bf16.msra.mxu0 0
    %209 = vmatprep.subr.bf16.mxu0 0
    %210 = vmatpush1.bf16.msra.mxu0 0
    %211 = vmatprep.subr.bf16.mxu0 0
    %212 = vmatpush1.bf16.msra.mxu0 %v73
    %213 = vmatprep.subr.bf16.mxu0 0
    %214 = vmatpush1.bf16.msra.mxu0 %v72
    %215 = vmatprep.subr.bf16.mxu0 0
    %216 = vmatpush1.bf16.msra.mxu0 %v71
    %217 = vmatprep.subr.bf16.mxu0 0
    %218 = vmatpush1.bf16.msra.mxu0 %v70
    %219 = vmatprep.subr.bf16.mxu0 0
    %220 = vmatpush2.bf16.msra.mxu0 0
    %221 = vmatprep.subr.bf16.mxu0 0
    %222 = vmatpush2.bf16.msra.mxu0 0
    %223 = vmatprep.subr.bf16.mxu0 0
    %224 = vmatpush2.bf16.msra.mxu0 0
    %225 = vmatprep.subr.bf16.mxu0 0
    %226 = vmatpush2.bf16.msra.mxu0 0
    %227 = vmatprep.subr.bf16.mxu0 0
    %228 = vmatpush2.bf16.msra.mxu0 0
    %229 = vmatprep.subr.bf16.mxu0 0
    %230 = vmatpush2.bf16.msra.mxu0 0
    %231 = vmatprep.subr.bf16.mxu0 0
    %232 = vmatpush2.bf16.msra.mxu0 0
    %233 = vmatprep.subr.bf16.mxu0 0
    %234 = vmatpush2.bf16.msra.mxu0 0
    %235 = vmatprep.mubr.bf16.mxu0 0
    %236 = vmatmul.mubr.bf16.gmra.mxu0 %v201
    %v237 = vpop.f32.mrf.mxu0
    %v238 = vadd.f32 %v52, %v237
    %v239 = vpop.f32.mrf.mxu0
    %v240 = vpop.f32.mrf.mxu0
    %v241 = vadd.f32 %v52, %v240
    %v242 = vpop.f32.mrf.mxu0
    %243 = vdwg.mxu0
    %v244 = vmax.f32 %v238, 0.0
    %v245 = vmax.f32 %v241, 0.0
    %v246 = vpack.c.bf16 %v245, %v244
    %v248 = vsel %vm149, %v246, 0
    %250 = vmatprep.subr.bf16.mxu0 0
    %251 = vmatpush1.bf16.msra.mxu0 0
    %252 = vmatprep.subr.bf16.mxu0 0
    %253 = vmatpush1.bf16.msra.mxu0 0
    %254 = vmatprep.subr.bf16.mxu0 0
    %255 = vmatpush1.bf16.msra.mxu0 0
    %256 = vmatprep.subr.bf16.mxu0 0
    %257 = vmatpush1.bf16.msra.mxu0 0
    %258 = vmatprep.subr.bf16.mxu0 0
    %259 = vmatpush1.bf16.msra.mxu0 0
    %260 = vmatprep.subr.bf16.mxu0 0
    %261 = vmatpush1.bf16.msra.mxu0 0
    %262 = vmatprep.subr.bf16.mxu0 0
    %263 = vmatpush1.bf16.msra.mxu0 %v146
    %264 = vmatprep.subr.bf16.mxu0 0
    %265 = vmatpush1.bf16.msra.mxu0 %v145
    %266 = vmatprep.subr.bf16.mxu0 0
    %267 = vmatpush2.bf16.msra.mxu0 0
    %268 = vmatprep.subr.bf16.mxu0 0
    %269 = vmatpush2.bf16.msra.mxu0 0
    %270 = vmatprep.subr.bf16.mxu0 0
    %271 = vmatpush2.bf16.msra.mxu0 0
    %272 = vmatprep.subr.bf16.mxu0 0
    %273 = vmatpush2.bf16.msra.mxu0 0
    %274 = vmatprep.subr.bf16.mxu0 0
    %275 = vmatpush2.bf16.msra.mxu0 0
    %276 = vmatprep.subr.bf16.mxu0 0
    %277 = vmatpush2.bf16.msra.mxu0 0
    %278 = vmatprep.subr.bf16.mxu0 0
    %279 = vmatpush2.bf16.msra.mxu0 0
    %280 = vmatprep.subr.bf16.mxu0 0
    %281 = vmatpush2.bf16.msra.mxu0 0
    %282 = vmatprep.mubr.bf16.mxu0 0
    %283 = vmatmul.mubr.bf16.gmra.mxu0 %v248
    %v284 = vpop.f32.mrf.mxu0
    %v285 = vadd.f32 %v135, %v284
    %v286 = vpop.f32.mrf.mxu0
    %v287 = vpop.f32.mrf.mxu0
    %v288 = vadd.f32 %v135, %v287
    %v289 = vpop.f32.mrf.mxu0
    %290 = vdwg.mxu0
    %v291 = vmax.f32 %v285, 0.0
    %v292 = vmax.f32 %v288, 0.0
    %v293 = vpack.c.bf16 %v292, %v291
    %v294 = vld [vmem:[%s6] sm:$0xff]
    %v295 = vld [vmem:[%s6 + $0x8] sm:$0xff]
    %v298 = vunpack.c.l.b16 %v294
    %v299 = vunpack.c.h.b16 %v294
    %v300 = vunpack.c.l.b16 %v295
    %v301 = vunpack.c.h.b16 %v295
    %v302 = vpack.c.b16 %v300, %v298
    %v303 = vpack.c.b16 %v301, %v299
    %vm306 = vcmask 130048
    %v308 = vsel %vm306, %v196, 0
    %310 = vmatprep.subr.bf16.mxu0 0
    %311 = vmatpush1.bf16.msra.mxu0 0
    %312 = vmatprep.subr.bf16.mxu0 0
    %313 = vmatpush1.bf16.msra.mxu0 0
    %314 = vmatprep.subr.bf16.mxu0 0
    %315 = vmatpush1.bf16.msra.mxu0 0
    %316 = vmatprep.subr.bf16.mxu0 0
    %317 = vmatpush1.bf16.msra.mxu0 0
    %318 = vmatprep.subr.bf16.mxu0 0
    %319 = vmatpush1.bf16.msra.mxu0 0
    %320 = vmatprep.subr.bf16.mxu0 0
    %321 = vmatpush1.bf16.msra.mxu0 0
    %322 = vmatprep.subr.bf16.mxu0 0
    %323 = vmatpush1.bf16.msra.mxu0 0
    %324 = vmatprep.subr.bf16.mxu0 %v303
    %325 = vmatpush1.bf16.msra.mxu0 %v302
    %326 = vmatprep.subr.bf16.mxu0 0
    %327 = vmatpush2.bf16.msra.mxu0 0
    %328 = vmatprep.subr.bf16.mxu0 0
    %329 = vmatpush2.bf16.msra.mxu0 0
    %330 = vmatprep.subr.bf16.mxu0 0
    %331 = vmatpush2.bf16.msra.mxu0 0
    %332 = vmatprep.subr.bf16.mxu0 0
    %333 = vmatpush2.bf16.msra.mxu0 0
    %334 = vmatprep.subr.bf16.mxu0 0
    %335 = vmatpush2.bf16.msra.mxu0 0
    %336 = vmatprep.subr.bf16.mxu0 0
    %337 = vmatpush2.bf16.msra.mxu0 0
    %338 = vmatprep.subr.bf16.mxu0 0
    %339 = vmatpush2.bf16.msra.mxu0 0
    %340 = vmatprep.subr.bf16.mxu0 0
    %341 = vmatpush2.bf16.msra.mxu0 0
    %342 = vmatprep.mubr.bf16.mxu0 0
    %343 = vmatmul.mubr.bf16.gmra.mxu0 %v308
    %v344 = vpop.f32.mrf.mxu0
    %v345 = vadd.f32 0.0, %v344
    %v346 = vpop.f32.mrf.mxu0
    %v347 = vadd.f32 0.0, %v346
    %v348 = vpop.f32.mrf.mxu0
    %v349 = vadd.f32 0.0, %v348
    %v350 = vpop.f32.mrf.mxu0
    %v351 = vadd.f32 0.0, %v350
    %352 = vdwg.mxu0
    %v353 = vld [vmem:[%s7] sm:$0xff]
    %v354 = vld [vmem:[%s7 + $0x8] sm:$0xff]
    %v357 = vunpack.c.l.b16 %v353
    %v358 = vunpack.c.h.b16 %v353
    %v359 = vunpack.c.l.b16 %v354
    %v360 = vunpack.c.h.b16 %v354
    %v361 = vpack.c.b16 %v359, %v357
    %v362 = vpack.c.b16 %v360, %v358
    %v366 = vsel %vm306, %v293, 0
    %368 = vmatprep.subr.bf16.mxu0 0
    %369 = vmatpush1.bf16.msra.mxu0 0
    %370 = vmatprep.subr.bf16.mxu0 0
    %371 = vmatpush1.bf16.msra.mxu0 0
    %372 = vmatprep.subr.bf16.mxu0 0
    %373 = vmatpush1.bf16.msra.mxu0 0
    %374 = vmatprep.subr.bf16.mxu0 0
    %375 = vmatpush1.bf16.msra.mxu0 0
    %376 = vmatprep.subr.bf16.mxu0 0
    %377 = vmatpush1.bf16.msra.mxu0 0
    %378 = vmatprep.subr.bf16.mxu0 0
    %379 = vmatpush1.bf16.msra.mxu0 0
    %380 = vmatprep.subr.bf16.mxu0 0
    %381 = vmatpush1.bf16.msra.mxu0 0
    %382 = vmatprep.subr.bf16.mxu0 %v362
    %383 = vmatpush1.bf16.msra.mxu0 %v361
    %384 = vmatprep.subr.bf16.mxu0 0
    %385 = vmatpush2.bf16.msra.mxu0 0
    %386 = vmatprep.subr.bf16.mxu0 0
    %387 = vmatpush2.bf16.msra.mxu0 0
    %388 = vmatprep.subr.bf16.mxu0 0
    %389 = vmatpush2.bf16.msra.mxu0 0
    %390 = vmatprep.subr.bf16.mxu0 0
    %391 = vmatpush2.bf16.msra.mxu0 0
    %392 = vmatprep.subr.bf16.mxu0 0
    %393 = vmatpush2.bf16.msra.mxu0 0
    %394 = vmatprep.subr.bf16.mxu0 0
    %395 = vmatpush2.bf16.msra.mxu0 0
    %396 = vmatprep.subr.bf16.mxu0 0
    %397 = vmatpush2.bf16.msra.mxu0 0
    %398 = vmatprep.subr.bf16.mxu0 0
    %399 = vmatpush2.bf16.msra.mxu0 0
    %400 = vmatprep.mubr.bf16.mxu0 0
    %401 = vmatmul.mubr.bf16.gmra.mxu0 %v366
    %v402 = vpop.f32.mrf.mxu0
    %v403 = vadd.f32 0.0, %v402
    %v404 = vpop.f32.mrf.mxu0
    %v405 = vadd.f32 0.0, %v404
    %v406 = vpop.f32.mrf.mxu0
    %v407 = vadd.f32 0.0, %v406
    %v408 = vpop.f32.mrf.mxu0
    %v409 = vadd.f32 0.0, %v408
    %410 = vdwg.mxu0
    %v411 = vmul.f32 %v345, %v403
    %v412 = vmul.f32 %v347, %v405
    %v413 = vmul.f32 %v349, %v407
    %v414 = vmul.f32 %v351, %v409
    %v415 = vadd.f32 %v411, %v412
    %416 = vadd.xlane.f32.xlu0 %v415
    %v417 = vpop.xlane.xlu0 %416
    %v418 = vadd.f32 %v413, %v414
    %419 = vadd.xlane.f32.xlu0 %v418
    %v420 = vpop.xlane.xlu0 %419
    %v421 = vld [vmem:[#allocation2] sm:$0x1]
    %423 = vset.pattern.permute.xlu0 0
    %424 = vperm.xlu0 %423, %v421
    %v425 = vpop.permute.xlu0 %424
    %v427 = vlaneseq
    %v428 = vshrl.u32 %v427, 7
    %v429 = vsub.s32 0, %v428
    %v430 = vrot.slane %v425, %v429
    %v431 = vadd.f32 %v417, %v430
    %v432 = vadd.f32 %v420, %v430
    %v435 = vlaneseq
    %v436 = vand.u32 %v435, 127
    %v437 = vlaneseq
    %v438 = vshrl.u32 %v437, 7
    %v439 = vsub.s32 %v436, %v438
    %v440 = vrot.slane %v431, %v439
    %v441 = vadd.s32 %v436, 4294967288
    %v442 = vlaneseq
    %v443 = vshrl.u32 %v442, 7
    %v444 = vsub.s32 %v441, %v443
    %v445 = vrot.slane %v432, %v444
    %vm446 = vcmask 130112
    %v447 = vsel %vm446, %v445, %v440
    %vm449 = vcmask 122880
    %450 = vst.msk [vmem:[#allocation3] sm:$0x1] %vm449, %v447
    // Predicated region
    $region38: #{bilinear_mlp_predictor.1} parent=1 // pred_check
      _
    $region39: #{bilinear_mlp_predictor.1} parent=1 // pred_check_branch
      %452 = sbr.rel (0) target = $region41
    $region40: #{bilinear_mlp_predictor.1} parent=1 // pred_region
      %s454 = ssub.s32 16, 16
      %455 = vsyncadd [#allocation4], %s454
      %s457 = sshll.u32 [#allocation3], 4
      %s458 = int_to_ptr.vmem [resolvable:$true] %s457
      %460 = dma.vmem_to_hbm [thread:$0]  %s458, 16, %s9, [#allocation4]
    $region41: #{bilinear_mlp_predictor.1} parent=1 // pred_fallthru
      _
    // Predicated region
    $region42: #{bilinear_mlp_predictor.1} parent=1 // pred_check
      _
    $region43: #{bilinear_mlp_predictor.1} parent=1 // pred_check_branch
      %462 = sbr.rel (0) target = $region45
    $region44: #{bilinear_mlp_predictor.1} parent=1 // pred_region
      %463 = dma.done [#allocation4], 16
    $region45: #{bilinear_mlp_predictor.1} parent=1 // pred_fallthru
      _
    %464 = vsyncpa [#allocation4], 1

</llo_original>
